<compile_context>
chip_gen: v6e
topology: v6e:2x2x1
jax: 0.10.0
libtpu: 0.0.40
codegen_flags: <defaults>
</compile_context>

<pallas_src>
import math

import jax
import jax.numpy as jnp
from jax import lax
from jax.experimental import pallas as pl
from jax.experimental.pallas import tpu as pltpu

EPS = 1e-5  # nn.LayerNorm default


def _patch_merging_kernel(x0_ref, x1_ref, w0_ref, w1_ref, wsum_ref, bias_ref,
                          o_ref):
    # x0_ref / x1_ref: (tm_r, W2, 2C) row-parity slabs of the merged tokens
    # w0_ref / w1_ref: (2C, 2Cout) affine-folded weight slabs (compute dtype)
    # wsum_ref, bias_ref: (1, 2Cout) f32 epilogue vectors
    # o_ref: (tm_r * W2, 2Cout)
    tm_r, w2, c2 = x0_ref.shape
    tm = tm_r * w2
    inv_n = 1.0 / (2.0 * c2)  # 1 / 4C

    # Collapse (tm_r, W2) -> tokens.  When W2 % 8 == 0 this is a pure layout
    # no-op (same vreg decomposition); otherwise Mosaic inserts a relayout.
    x0 = x0_ref[...].reshape(tm, c2)
    x1 = x1_ref[...].reshape(tm, c2)

    # Split-K matmul on the raw (un-normalized) activations, f32 accumulation.
    acc = jnp.dot(x0, w0_ref[...], preferred_element_type=jnp.float32)
    acc = acc + jnp.dot(x1, w1_ref[...], preferred_element_type=jnp.float32)

    # One-pass LayerNorm statistics over the 4C merged channels, in f32.
    x0f = x0.astype(jnp.float32)
    x1f = x1.astype(jnp.float32)
    s = (jnp.sum(x0f, axis=-1, keepdims=True)
         + jnp.sum(x1f, axis=-1, keepdims=True))
    ss = (jnp.sum(x0f * x0f, axis=-1, keepdims=True)
          + jnp.sum(x1f * x1f, axis=-1, keepdims=True))
    mean = s * inv_n
    var = jnp.maximum(ss * inv_n - mean * mean, 0.0)
    inv_std = lax.rsqrt(var + EPS)

    # LN affine already folded into w/bias:
    #   y = ((x - mean) * inv_std) @ W' + bias
    #     = inv_std * (acc - mean * rowsum(W')) + bias
    y = (acc - mean * wsum_ref[...]) * inv_std + bias_ref[...]
    o_ref[...] = y.astype(o_ref.dtype)


def patch_merging(x, H, W, weight, gamma, beta, *, tokens_per_tile=512):
    """x: (B, H*W, C) -> (B, (H/2)*(W/2), 2C). weight: (2C, 4C) torch layout."""
    B, L, C = x.shape
    assert L == H * W, "input feature has wrong size"
    assert H % 2 == 0 and W % 2 == 0, f"x size ({H}*{W}) are not even."
    H2, W2 = H // 2, W // 2
    Cout = 2 * C
    R = B * H2                 # row-groups; each group holds W2 merged tokens
    rows = R * W2              # total merged tokens
    cdt = x.dtype              # matmul compute dtype (bf16 in -> bf16 MXU)

    # Free reshape: (B, H*W, C) -> (B*H2, 2, W2, 2C); last dim is [q=0 | q=1].
    xr = x.reshape(R, 2, W2, 2 * C)

    # ---- fold LayerNorm affine into the reduction weight (exact) ----
    #   ((x - mean)*inv_std*gamma + beta) @ W^T
    # = inv_std * (x @ W' - mean * rowsum(W')) + beta @ W^T,  W' = diag(gamma) W^T
    w_t = jnp.transpose(weight).astype(jnp.float32)            # (4C, 2Cout)
    g = gamma.astype(jnp.float32)
    b = beta.astype(jnp.float32)
    w_aff = g[:, None] * w_t                                   # (4C, 2Cout)
    wsum = jnp.sum(w_aff, axis=0, keepdims=True)               # (1, 2Cout)
    bias = b[None, :] @ w_t                                    # (1, 2Cout)
    # Merged-token channel order is [x0|x1|x2|x3] = [(p0,q0),(p1,q0),(p0,q1),(p1,q1)];
    # slab p carries channels [q=0 | q=1], so reorder the weight rows to match.
    w_p0 = jnp.concatenate([w_aff[0:C], w_aff[2 * C:3 * C]], axis=0).astype(cdt)
    w_p1 = jnp.concatenate([w_aff[C:2 * C], w_aff[3 * C:4 * C]], axis=0).astype(cdt)

    # ---- tiling: tm_r row-groups per step (= tm_r * W2 tokens) ----
    # Keep TM = tm_r * W2 a multiple of 8 so the 2D output block stays
    # sublane-aligned; ragged last tile is handled by pl.cdiv + masked writes.
    align = 8 // math.gcd(W2, 8)
    tm_r = max(1, tokens_per_tile // W2)
    tm_r = ((tm_r + align - 1) // align) * align
    tm_r = min(tm_r, R)
    TM = tm_r * W2
    grid = (pl.cdiv(R, tm_r),)

    cost = pl.CostEstimate(
        flops=2 * rows * (4 * C) * Cout,
        transcendentals=rows,
        bytes_accessed=(rows * (4 * C + Cout) * x.dtype.itemsize
                        + 2 * (2 * C) * Cout * jnp.dtype(cdt).itemsize),
    )

    out = pl.pallas_call(
        _patch_merging_kernel,
        out_shape=jax.ShapeDtypeStruct((rows, Cout), x.dtype),
        grid_spec=pltpu.PrefetchScalarGridSpec(
            num_scalar_prefetch=0,
            grid=grid,
            in_specs=[
                # row-parity slabs p=0 / p=1 of the same (un-copied) view
                pl.BlockSpec((tm_r, None, W2, 2 * C), lambda i: (i, 0, 0, 0)),
                pl.BlockSpec((tm_r, None, W2, 2 * C), lambda i: (i, 1, 0, 0)),
                pl.BlockSpec((2 * C, Cout), lambda i: (0, 0)),
                pl.BlockSpec((2 * C, Cout), lambda i: (0, 0)),
                pl.BlockSpec((1, Cout), lambda i: (0, 0)),
                pl.BlockSpec((1, Cout), lambda i: (0, 0)),
            ],
            out_specs=pl.BlockSpec((TM, Cout), lambda i: (i, 0)),
        ),
        compiler_params=pltpu.CompilerParams(
            dimension_semantics=("parallel",)),
        cost_estimate=cost,
    )(xr, xr, w_p0, w_p1, wsum, bias)

    return out.reshape(B, H2 * W2, Cout)


def _reference(x, H, W, weight, gamma, beta):
    B, L, C = x.shape
    xv = x.astype(jnp.float32).reshape(B, H, W, C)
    x0 = xv[:, 0::2, 0::2, :]
    x1 = xv[:, 1::2, 0::2, :]
    x2 = xv[:, 0::2, 1::2, :]
    x3 = xv[:, 1::2, 1::2, :]
    xm = jnp.concatenate([x0, x1, x2, x3], axis=-1).reshape(B, -1, 4 * C)
    mean = jnp.mean(xm, axis=-1, keepdims=True)
    var = jnp.mean(jnp.square(xm - mean), axis=-1, keepdims=True)
    xn = ((xm - mean) / jnp.sqrt(var + EPS) * gamma.astype(jnp.float32)
          + beta.astype(jnp.float32))
    return jnp.einsum("blk,ok->blo", xn, weight.astype(jnp.float32))


if __name__ == "__main__":
    # Small shapes consistent with the module: B=2, H=W=16, dim=C=4.
    B, H, W, C = 2, 16, 16, 4
    key = jax.random.PRNGKey(0)
    kx, kw, kg, kb = jax.random.split(key, 4)

    x = jax.random.normal(kx, (B, H * W, C), dtype=jnp.float32)
    # nn.Linear(4*dim, 2*dim, bias=False).weight has shape (2*dim, 4*dim)
    weight = jax.random.normal(kw, (2 * C, 4 * C), dtype=jnp.float32) * 0.1
    # LayerNorm(4*dim) affine params (deterministic non-trivial init)
    gamma = 1.0 + 0.05 * jax.random.normal(kg, (4 * C,), dtype=jnp.float32)
    beta = 0.05 * jax.random.normal(kb, (4 * C,), dtype=jnp.float32)

    # f32 path (matches the PyTorch module's default dtype)
    out = patch_merging(x, H, W, weight, gamma, beta)
    out = jax.block_until_ready(out)
    ref = _reference(x, H, W, weight, gamma, beta)
    assert out.shape == (B, (H // 2) * (W // 2), 2 * C)
    assert jnp.allclose(out, ref, atol=1e-4, rtol=1e-4)

    # bf16 path (exercises the bf16-MXU compute-dtype route)
    out_bf = patch_merging(x.astype(jnp.bfloat16), H, W,
                           weight.astype(jnp.bfloat16),
                           gamma.astype(jnp.bfloat16),
                           beta.astype(jnp.bfloat16))
    out_bf = jax.block_until_ready(out_bf)
    ref_bf = _reference(x.astype(jnp.bfloat16), H, W, weight, gamma, beta)
    assert jnp.allclose(out_bf.astype(jnp.float32), ref_bf, atol=3e-2, rtol=3e-2)

    print("KERNEL_OK")
</pallas_src>

<mosaic_0001>
module attributes {stable_mosaic.version = 11 : i64} {
  func.func @_patch_merging_kernel(%arg0: i32, %arg1: memref<16x1x8x8xf32, #tpu.memory_space<vmem>>, %arg2: memref<16x1x8x8xf32, #tpu.memory_space<vmem>>, %arg3: memref<8x8xf32, #tpu.memory_space<vmem>>, %arg4: memref<8x8xf32, #tpu.memory_space<vmem>>, %arg5: memref<1x8xf32, #tpu.memory_space<vmem>>, %arg6: memref<1x8xf32, #tpu.memory_space<vmem>>, %arg7: memref<128x8xf32, #tpu.memory_space<vmem>>) attributes {dimension_semantics = [#tpu.dimension_semantics<parallel>], iteration_bounds = array<i64: 1>, scalar_prefetch = 0 : i64, scratch_operands = 0 : i64, tpu.core_type = #tpu.core_type<tc>, window_params = [{transform_indices = @transform_0, window_bounds = array<i64: 16, 1, 8, 8>}, {transform_indices = @transform_1, window_bounds = array<i64: 16, 1, 8, 8>}, {pipeline_mode = #tpu.pipeline_mode<synchronous>, transform_indices = @transform_2, window_bounds = array<i64: 8, 8>}, {pipeline_mode = #tpu.pipeline_mode<synchronous>, transform_indices = @transform_3, window_bounds = array<i64: 8, 8>}, {pipeline_mode = #tpu.pipeline_mode<synchronous>, transform_indices = @transform_4, window_bounds = array<i64: 1, 8>}, {pipeline_mode = #tpu.pipeline_mode<synchronous>, transform_indices = @transform_5, window_bounds = array<i64: 1, 8>}, {transform_indices = @transform_6, window_bounds = array<i64: 128, 8>}]} {
    %c0 = arith.constant 0 : index
    %c0_0 = arith.constant 0 : index
    %c0_1 = arith.constant 0 : index
    %c0_2 = arith.constant 0 : index
    %0 = vector.load %arg1[%c0, %c0_0, %c0_1, %c0_2] : memref<16x1x8x8xf32, #tpu.memory_space<vmem>>, vector<16x1x8x8xf32>
    %1 = vector.shape_cast %0 : vector<16x1x8x8xf32> to vector<16x8x8xf32>
    %2 = vector.shape_cast %1 : vector<16x8x8xf32> to vector<128x8xf32>
    %c0_3 = arith.constant 0 : index
    %c0_4 = arith.constant 0 : index
    %c0_5 = arith.constant 0 : index
    %c0_6 = arith.constant 0 : index
    %3 = vector.load %arg2[%c0_3, %c0_4, %c0_5, %c0_6] : memref<16x1x8x8xf32, #tpu.memory_space<vmem>>, vector<16x1x8x8xf32>
    %4 = vector.shape_cast %3 : vector<16x1x8x8xf32> to vector<16x8x8xf32>
    %5 = vector.shape_cast %4 : vector<16x8x8xf32> to vector<128x8xf32>
    %c0_7 = arith.constant 0 : index
    %c0_8 = arith.constant 0 : index
    %6 = vector.load %arg3[%c0_7, %c0_8] : memref<8x8xf32, #tpu.memory_space<vmem>>, vector<8x8xf32>
    %cst = arith.constant dense<0.000000e+00> : vector<128x8xf32>
    %7 = tpu.matmul %2, %6, %cst {dimension_numbers = #tpu.dot_dimension_numbers<[1], [0], [0], [1], [0, 0, 1, 1], [], []>} : vector<128x8xf32>, vector<8x8xf32>, vector<128x8xf32> -> vector<128x8xf32>
    %c0_9 = arith.constant 0 : index
    %c0_10 = arith.constant 0 : index
    %8 = vector.load %arg4[%c0_9, %c0_10] : memref<8x8xf32, #tpu.memory_space<vmem>>, vector<8x8xf32>
    %cst_11 = arith.constant dense<0.000000e+00> : vector<128x8xf32>
    %9 = tpu.matmul %5, %8, %cst_11 {dimension_numbers = #tpu.dot_dimension_numbers<[1], [0], [0], [1], [0, 0, 1, 1], [], []>} : vector<128x8xf32>, vector<8x8xf32>, vector<128x8xf32> -> vector<128x8xf32>
    %10 = arith.addf %7, %9 : vector<128x8xf32>
    %cst_12 = arith.constant dense<0.000000e+00> : vector<128xf32>
    %11 = vector.multi_reduction <add>, %2, %cst_12 [1] : vector<128x8xf32> to vector<128xf32>
    %12 = vector.shape_cast %11 : vector<128xf32> to vector<128x1xf32>
    %cst_13 = arith.constant dense<0.000000e+00> : vector<128xf32>
    %13 = vector.multi_reduction <add>, %5, %cst_13 [1] : vector<128x8xf32> to vector<128xf32>
    %14 = vector.shape_cast %13 : vector<128xf32> to vector<128x1xf32>
    %15 = arith.addf %12, %14 : vector<128x1xf32>
    %16 = arith.mulf %2, %2 : vector<128x8xf32>
    %cst_14 = arith.constant dense<0.000000e+00> : vector<128xf32>
    %17 = vector.multi_reduction <add>, %16, %cst_14 [1] : vector<128x8xf32> to vector<128xf32>
    %18 = vector.shape_cast %17 : vector<128xf32> to vector<128x1xf32>
    %19 = arith.mulf %5, %5 : vector<128x8xf32>
    %cst_15 = arith.constant dense<0.000000e+00> : vector<128xf32>
    %20 = vector.multi_reduction <add>, %19, %cst_15 [1] : vector<128x8xf32> to vector<128xf32>
    %21 = vector.shape_cast %20 : vector<128xf32> to vector<128x1xf32>
    %22 = arith.addf %18, %21 : vector<128x1xf32>
    %cst_16 = arith.constant 6.250000e-02 : f32
    %23 = vector.broadcast %cst_16 : f32 to vector<128x1xf32>
    %24 = arith.mulf %15, %23 : vector<128x1xf32>
    %cst_17 = arith.constant 6.250000e-02 : f32
    %25 = vector.broadcast %cst_17 : f32 to vector<128x1xf32>
    %26 = arith.mulf %22, %25 : vector<128x1xf32>
    %27 = arith.mulf %24, %24 : vector<128x1xf32>
    %28 = arith.subf %26, %27 : vector<128x1xf32>
    %cst_18 = arith.constant 0.000000e+00 : f32
    %29 = vector.broadcast %cst_18 : f32 to vector<128x1xf32>
    %30 = arith.maximumf %28, %29 : vector<128x1xf32>
    %cst_19 = arith.constant 9.99999974E-6 : f32
    %31 = vector.broadcast %cst_19 : f32 to vector<128x1xf32>
    %32 = arith.addf %30, %31 : vector<128x1xf32>
    %33 = math.rsqrt %32 : vector<128x1xf32>
    %c0_20 = arith.constant 0 : index
    %c0_21 = arith.constant 0 : index
    %34 = vector.load %arg5[%c0_20, %c0_21] : memref<1x8xf32, #tpu.memory_space<vmem>>, vector<1x8xf32>
    %35 = vector.broadcast %24 : vector<128x1xf32> to vector<128x8xf32>
    %36 = vector.broadcast %34 : vector<1x8xf32> to vector<128x8xf32>
    %37 = arith.mulf %35, %36 : vector<128x8xf32>
    %38 = arith.subf %10, %37 : vector<128x8xf32>
    %39 = vector.broadcast %33 : vector<128x1xf32> to vector<128x8xf32>
    %40 = arith.mulf %38, %39 : vector<128x8xf32>
    %c0_22 = arith.constant 0 : index
    %c0_23 = arith.constant 0 : index
    %41 = vector.load %arg6[%c0_22, %c0_23] : memref<1x8xf32, #tpu.memory_space<vmem>>, vector<1x8xf32>
    %42 = vector.broadcast %41 : vector<1x8xf32> to vector<128x8xf32>
    %43 = arith.addf %40, %42 : vector<128x8xf32>
    %c0_24 = arith.constant 0 : index
    %c0_25 = arith.constant 0 : index
    %44 = vector.load %arg7[%c0_24, %c0_25] : memref<128x8xf32, #tpu.memory_space<vmem>>, vector<128x8xf32>
    tpu.vector_store %arg7[%c0_24, %c0_25], %43 {strides = array<i32>} : memref<128x8xf32, #tpu.memory_space<vmem>>, vector<128x8xf32>,
    return
  }
  func.func @transform_0(%arg0: i32) -> (i32, i32, i32, i32) {
    %c0_i32 = arith.constant 0 : i32
    %c0_i32_0 = arith.constant 0 : i32
    %c0_i32_1 = arith.constant 0 : i32
    %c0_i32_2 = arith.constant 0 : i32
    return %arg0, %c0_i32, %c0_i32_0, %c0_i32_1 : i32, i32, i32, i32
  }
  func.func @transform_1(%arg0: i32) -> (i32, i32, i32, i32) {
    %c1_i32 = arith.constant 1 : i32
    %c0_i32 = arith.constant 0 : i32
    %c0_i32_0 = arith.constant 0 : i32
    %c0_i32_1 = arith.constant 0 : i32
    return %arg0, %c1_i32, %c0_i32, %c0_i32_0 : i32, i32, i32, i32
  }
  func.func @transform_2(%arg0: i32) -> (i32, i32) {
    %c0_i32 = arith.constant 0 : i32
    %c0_i32_0 = arith.constant 0 : i32
    %c0_i32_1 = arith.constant 0 : i32
    return %c0_i32, %c0_i32_0 : i32, i32
  }
  func.func @transform_3(%arg0: i32) -> (i32, i32) {
    %c0_i32 = arith.constant 0 : i32
    %c0_i32_0 = arith.constant 0 : i32
    %c0_i32_1 = arith.constant 0 : i32
    return %c0_i32, %c0_i32_0 : i32, i32
  }
  func.func @transform_4(%arg0: i32) -> (i32, i32) {
    %c0_i32 = arith.constant 0 : i32
    %c0_i32_0 = arith.constant 0 : i32
    %c0_i32_1 = arith.constant 0 : i32
    return %c0_i32, %c0_i32_0 : i32, i32
  }
  func.func @transform_5(%arg0: i32) -> (i32, i32) {
    %c0_i32 = arith.constant 0 : i32
    %c0_i32_0 = arith.constant 0 : i32
    %c0_i32_1 = arith.constant 0 : i32
    return %c0_i32, %c0_i32_0 : i32, i32
  }
  func.func @transform_6(%arg0: i32) -> (i32, i32) {
    %c0_i32 = arith.constant 0 : i32
    %c0_i32_0 = arith.constant 0 : i32
    return %arg0, %c0_i32 : i32, i32
  }
}

</mosaic_0001>

<llo_original>
// kernel: tpu_custom_call.1
$region0: #{tpu_custom_call.1}
  #allocation0 [shape = 'u32[]', space=smem, size = 0x4, offset = 0x4, fixed_abs, tag = 'smem constant byte address 0x4 - core index']
  #allocation1 [shape = 'u32[144,128]{1,0:T(1,128)}', space=vmem, size = 0x12000, scoped, tag = 'internal scratch']
  %s0 = inlined_call_operand.vmem [shape: f32[16,2,8,8], index: 0, kind: input, shape index: {}]
  %s1 = inlined_call_operand.vmem [shape: f32[16,2,8,8], index: 1, kind: input, shape index: {}]
  %s2 = inlined_call_operand.vmem [shape: f32[8,8], index: 2, kind: input, shape index: {}]
  %s3 = inlined_call_operand.vmem [shape: f32[8,8], index: 3, kind: input, shape index: {}]
  %s4 = inlined_call_operand.vmem [shape: f32[1,8], index: 4, kind: input, shape index: {}]
  %s5 = inlined_call_operand.vmem [shape: f32[1,8], index: 5, kind: input, shape index: {}]
  %s6 = inlined_call_operand.vmem [shape: f32[128,8], index: 6, kind: output, shape index: {}]
  %s7 = sld [smem:[#allocation0]]
  $region110: #{tpu_custom_call.1} parent=0
    _
  %s9 = ssub.s32 1, %s7
  %s10 = scalar_select 0, %s9, %s7
  $region1: #{tpu_custom_call.1} parent=0
    #allocation2 [shape = 'u8[65536]{0}', space=vmem, size = 0x10000, scoped, tag = 'input window, operand 0, single buffered']
    #allocation3 [shape = 'u8[65536]{0}', space=vmem, size = 0x10000, scoped, tag = 'input window, operand 1, single buffered']
    // Predicated region
    $region2: #{tpu_custom_call.1} parent=1 // pred_check
      _
    $region3: #{tpu_custom_call.1} parent=1 // pred_check_branch
      %12 = sbr.rel (0) target = $region5
    $region4: #{tpu_custom_call.1} parent=1 // pred_region
      // Predicated region
      $region6: #{tpu_custom_call.1} parent=4 // pred_check
        _
      $region7: #{tpu_custom_call.1} parent=4 // pred_check_branch
        %14 = sbr.rel (0) target = $region9
      $region8: #{tpu_custom_call.1} parent=4 // pred_region
        // Predicated region
        $region10: #{tpu_custom_call.1} parent=8 // pred_check
          _
        $region11: #{tpu_custom_call.1} parent=8 // pred_check_branch
          %16 = sbr.rel (0) target = $region13
        $region12: #{tpu_custom_call.1} parent=8 // pred_region
          // Predicated region
          $region25: #{tpu_custom_call.1} parent=12 // pred_check
            _
          $region26: #{tpu_custom_call.1} parent=12 // pred_check_branch
            %62 = sbr.rel (0) target = $region28
          $region27: #{tpu_custom_call.1} parent=12 // pred_region
            loop: start=0, step=1, limit=1
            $region29: #{tpu_custom_call.1} parent=27 // loop_pre_header
              _
            $region30: #{tpu_custom_call.1} parent=27 // loop_header
              %s64 = sphi 0, %s68
              %p65 = scmp.ge.s32.totalorder %s64, 1
              %s69 = sphi %s0, %s0
              %s70 = sphi [#allocation2], [#allocation2]
            $region31: #{tpu_custom_call.1} parent=27 // loop_header_branch
              %67 = sbr.rel (%p65) target = $region35
            $region32: #{tpu_custom_call.1} parent=27 // loop_body
              %v71 = vld [vmem:[%s69] sm:$0xff]
              %72 = vst [vmem:[%s70] sm:$0xff] %v71
              %v73 = vld [vmem:[%s69 + $0x10] sm:$0xff]
              %74 = vst [vmem:[%s70 + $0x8] sm:$0xff] %v73
              %v75 = vld [vmem:[%s69 + $0x20] sm:$0xff]
              %76 = vst [vmem:[%s70 + $0x10] sm:$0xff] %v75
              %v77 = vld [vmem:[%s69 + $0x30] sm:$0xff]
              %78 = vst [vmem:[%s70 + $0x18] sm:$0xff] %v77
              %v79 = vld [vmem:[%s69 + $0x40] sm:$0xff]
              %80 = vst [vmem:[%s70 + $0x20] sm:$0xff] %v79
              %v81 = vld [vmem:[%s69 + $0x50] sm:$0xff]
              %82 = vst [vmem:[%s70 + $0x28] sm:$0xff] %v81
              %v83 = vld [vmem:[%s69 + $0x60] sm:$0xff]
              %84 = vst [vmem:[%s70 + $0x30] sm:$0xff] %v83
              %v85 = vld [vmem:[%s69 + $0x70] sm:$0xff]
              %86 = vst [vmem:[%s70 + $0x38] sm:$0xff] %v85
              %v87 = vld [vmem:[%s69 + $0x80] sm:$0xff]
              %88 = vst [vmem:[%s70 + $0x40] sm:$0xff] %v87
              %v89 = vld [vmem:[%s69 + $0x90] sm:$0xff]
              %90 = vst [vmem:[%s70 + $0x48] sm:$0xff] %v89
              %v91 = vld [vmem:[%s69 + $0xa0] sm:$0xff]
              %92 = vst [vmem:[%s70 + $0x50] sm:$0xff] %v91
              %v93 = vld [vmem:[%s69 + $0xb0] sm:$0xff]
              %94 = vst [vmem:[%s70 + $0x58] sm:$0xff] %v93
              %v95 = vld [vmem:[%s69 + $0xc0] sm:$0xff]
              %96 = vst [vmem:[%s70 + $0x60] sm:$0xff] %v95
              %v97 = vld [vmem:[%s69 + $0xd0] sm:$0xff]
              %98 = vst [vmem:[%s70 + $0x68] sm:$0xff] %v97
              %v99 = vld [vmem:[%s69 + $0xe0] sm:$0xff]
              %100 = vst [vmem:[%s70 + $0x70] sm:$0xff] %v99
              %v101 = vld [vmem:[%s69 + $0xf0] sm:$0xff]
              %102 = vst [vmem:[%s70 + $0x78] sm:$0xff] %v101
            $region33: #{tpu_custom_call.1} parent=27 // loop_footer
              %s68 = sadd.s32 1, %s64
            $region34: #{tpu_custom_call.1} parent=27 // loop_footer_branch
              %63 = sbr.rel target = $region30
            $region35: #{tpu_custom_call.1} parent=27 // loop_exit
              _
          $region28: #{tpu_custom_call.1} parent=12 // pred_fallthru
            _
          // Predicated region
          $region36: #{tpu_custom_call.1} parent=12 // pred_check
            _
          $region37: #{tpu_custom_call.1} parent=12 // pred_check_branch
            %104 = sbr.rel target = $region39
          $region38: #{tpu_custom_call.1} parent=12 // pred_region
            _
          $region39: #{tpu_custom_call.1} parent=12 // pred_fallthru
            _
        $region13: #{tpu_custom_call.1} parent=8 // pred_fallthru
          _
        // Predicated region
        $region14: #{tpu_custom_call.1} parent=8 // pred_check
          _
        $region15: #{tpu_custom_call.1} parent=8 // pred_check_branch
          %18 = sbr.rel target = $region17
        $region16: #{tpu_custom_call.1} parent=8 // pred_region
          %s20 = ssub.s32 256, 1
          loop: start=0, step=1, limit=1
          $region18: #{tpu_custom_call.1} parent=16 // loop_pre_header
            _
          $region19: #{tpu_custom_call.1} parent=16 // loop_header
            %s22 = sphi 0, %s26
            %p23 = scmp.ge.s32.totalorder %s22, 1
            %s27 = sphi %s0, %s0
            %s28 = sphi [#allocation2], [#allocation2]
          $region20: #{tpu_custom_call.1} parent=16 // loop_header_branch
            %25 = sbr.rel (%p23) target = $region24
          $region21: #{tpu_custom_call.1} parent=16 // loop_body
            %v29 = vld [vmem:[%s27] sm:%s20]
            %30 = vst [vmem:[%s28] sm:%s20] %v29
            %v31 = vld [vmem:[%s27 + $0x10] sm:%s20]
            %32 = vst [vmem:[%s28 + $0x8] sm:%s20] %v31
            %v33 = vld [vmem:[%s27 + $0x20] sm:%s20]
            %34 = vst [vmem:[%s28 + $0x10] sm:%s20] %v33
            %v35 = vld [vmem:[%s27 + $0x30] sm:%s20]
            %36 = vst [vmem:[%s28 + $0x18] sm:%s20] %v35
            %v37 = vld [vmem:[%s27 + $0x40] sm:%s20]
            %38 = vst [vmem:[%s28 + $0x20] sm:%s20] %v37
            %v39 = vld [vmem:[%s27 + $0x50] sm:%s20]
            %40 = vst [vmem:[%s28 + $0x28] sm:%s20] %v39
            %v41 = vld [vmem:[%s27 + $0x60] sm:%s20]
            %42 = vst [vmem:[%s28 + $0x30] sm:%s20] %v41
            %v43 = vld [vmem:[%s27 + $0x70] sm:%s20]
            %44 = vst [vmem:[%s28 + $0x38] sm:%s20] %v43
            %v45 = vld [vmem:[%s27 + $0x80] sm:%s20]
            %46 = vst [vmem:[%s28 + $0x40] sm:%s20] %v45
            %v47 = vld [vmem:[%s27 + $0x90] sm:%s20]
            %48 = vst [vmem:[%s28 + $0x48] sm:%s20] %v47
            %v49 = vld [vmem:[%s27 + $0xa0] sm:%s20]
            %50 = vst [vmem:[%s28 + $0x50] sm:%s20] %v49
            %v51 = vld [vmem:[%s27 + $0xb0] sm:%s20]
            %52 = vst [vmem:[%s28 + $0x58] sm:%s20] %v51
            %v53 = vld [vmem:[%s27 + $0xc0] sm:%s20]
            %54 = vst [vmem:[%s28 + $0x60] sm:%s20] %v53
            %v55 = vld [vmem:[%s27 + $0xd0] sm:%s20]
            %56 = vst [vmem:[%s28 + $0x68] sm:%s20] %v55
            %v57 = vld [vmem:[%s27 + $0xe0] sm:%s20]
            %58 = vst [vmem:[%s28 + $0x70] sm:%s20] %v57
            %v59 = vld [vmem:[%s27 + $0xf0] sm:%s20]
            %60 = vst [vmem:[%s28 + $0x78] sm:%s20] %v59
          $region22: #{tpu_custom_call.1} parent=16 // loop_footer
            %s26 = sadd.s32 1, %s22
          $region23: #{tpu_custom_call.1} parent=16 // loop_footer_branch
            %21 = sbr.rel target = $region19
          $region24: #{tpu_custom_call.1} parent=16 // loop_exit
            _
        $region17: #{tpu_custom_call.1} parent=8 // pred_fallthru
          _
      $region9: #{tpu_custom_call.1} parent=4 // pred_fallthru
        _
      %105 = vnop
    $region5: #{tpu_custom_call.1} parent=1 // pred_fallthru
      _
    // Predicated region
    $region40: #{tpu_custom_call.1} parent=1 // pred_check
      _
    $region41: #{tpu_custom_call.1} parent=1 // pred_check_branch
      %107 = sbr.rel (0) target = $region43
    $region42: #{tpu_custom_call.1} parent=1 // pred_region
      %s108 = scalar_lea.vmem %s1, 8
      // Predicated region
      $region44: #{tpu_custom_call.1} parent=42 // pred_check
        _
      $region45: #{tpu_custom_call.1} parent=42 // pred_check_branch
        %110 = sbr.rel (0) target = $region47
      $region46: #{tpu_custom_call.1} parent=42 // pred_region
        // Predicated region
        $region48: #{tpu_custom_call.1} parent=46 // pred_check
          _
        $region49: #{tpu_custom_call.1} parent=46 // pred_check_branch
          %112 = sbr.rel (0) target = $region51
        $region50: #{tpu_custom_call.1} parent=46 // pred_region
          // Predicated region
          $region63: #{tpu_custom_call.1} parent=50 // pred_check
            _
          $region64: #{tpu_custom_call.1} parent=50 // pred_check_branch
            %158 = sbr.rel (0) target = $region66
          $region65: #{tpu_custom_call.1} parent=50 // pred_region
            loop: start=0, step=1, limit=1
            $region67: #{tpu_custom_call.1} parent=65 // loop_pre_header
              _
            $region68: #{tpu_custom_call.1} parent=65 // loop_header
              %s160 = sphi 0, %s164
              %p161 = scmp.ge.s32.totalorder %s160, 1
              %s165 = sphi %s108, %s108
              %s166 = sphi [#allocation3], [#allocation3]
            $region69: #{tpu_custom_call.1} parent=65 // loop_header_branch
              %163 = sbr.rel (%p161) target = $region73
            $region70: #{tpu_custom_call.1} parent=65 // loop_body
              %v167 = vld [vmem:[%s165] sm:$0xff]
              %168 = vst [vmem:[%s166] sm:$0xff] %v167
              %v169 = vld [vmem:[%s165 + $0x10] sm:$0xff]
              %170 = vst [vmem:[%s166 + $0x8] sm:$0xff] %v169
              %v171 = vld [vmem:[%s165 + $0x20] sm:$0xff]
              %172 = vst [vmem:[%s166 + $0x10] sm:$0xff] %v171
              %v173 = vld [vmem:[%s165 + $0x30] sm:$0xff]
              %174 = vst [vmem:[%s166 + $0x18] sm:$0xff] %v173
              %v175 = vld [vmem:[%s165 + $0x40] sm:$0xff]
              %176 = vst [vmem:[%s166 + $0x20] sm:$0xff] %v175
              %v177 = vld [vmem:[%s165 + $0x50] sm:$0xff]
              %178 = vst [vmem:[%s166 + $0x28] sm:$0xff] %v177
              %v179 = vld [vmem:[%s165 + $0x60] sm:$0xff]
              %180 = vst [vmem:[%s166 + $0x30] sm:$0xff] %v179
              %v181 = vld [vmem:[%s165 + $0x70] sm:$0xff]
              %182 = vst [vmem:[%s166 + $0x38] sm:$0xff] %v181
              %v183 = vld [vmem:[%s165 + $0x80] sm:$0xff]
              %184 = vst [vmem:[%s166 + $0x40] sm:$0xff] %v183
              %v185 = vld [vmem:[%s165 + $0x90] sm:$0xff]
              %186 = vst [vmem:[%s166 + $0x48] sm:$0xff] %v185
              %v187 = vld [vmem:[%s165 + $0xa0] sm:$0xff]
              %188 = vst [vmem:[%s166 + $0x50] sm:$0xff] %v187
              %v189 = vld [vmem:[%s165 + $0xb0] sm:$0xff]
              %190 = vst [vmem:[%s166 + $0x58] sm:$0xff] %v189
              %v191 = vld [vmem:[%s165 + $0xc0] sm:$0xff]
              %192 = vst [vmem:[%s166 + $0x60] sm:$0xff] %v191
              %v193 = vld [vmem:[%s165 + $0xd0] sm:$0xff]
              %194 = vst [vmem:[%s166 + $0x68] sm:$0xff] %v193
              %v195 = vld [vmem:[%s165 + $0xe0] sm:$0xff]
              %196 = vst [vmem:[%s166 + $0x70] sm:$0xff] %v195
              %v197 = vld [vmem:[%s165 + $0xf0] sm:$0xff]
              %198 = vst [vmem:[%s166 + $0x78] sm:$0xff] %v197
            $region71: #{tpu_custom_call.1} parent=65 // loop_footer
              %s164 = sadd.s32 1, %s160
            $region72: #{tpu_custom_call.1} parent=65 // loop_footer_branch
              %159 = sbr.rel target = $region68
            $region73: #{tpu_custom_call.1} parent=65 // loop_exit
              _
          $region66: #{tpu_custom_call.1} parent=50 // pred_fallthru
            _
          // Predicated region
          $region74: #{tpu_custom_call.1} parent=50 // pred_check
            _
          $region75: #{tpu_custom_call.1} parent=50 // pred_check_branch
            %200 = sbr.rel target = $region77
          $region76: #{tpu_custom_call.1} parent=50 // pred_region
            _
          $region77: #{tpu_custom_call.1} parent=50 // pred_fallthru
            _
        $region51: #{tpu_custom_call.1} parent=46 // pred_fallthru
          _
        // Predicated region
        $region52: #{tpu_custom_call.1} parent=46 // pred_check
          _
        $region53: #{tpu_custom_call.1} parent=46 // pred_check_branch
          %114 = sbr.rel target = $region55
        $region54: #{tpu_custom_call.1} parent=46 // pred_region
          %s116 = ssub.s32 256, 1
          loop: start=0, step=1, limit=1
          $region56: #{tpu_custom_call.1} parent=54 // loop_pre_header
            _
          $region57: #{tpu_custom_call.1} parent=54 // loop_header
            %s118 = sphi 0, %s122
            %p119 = scmp.ge.s32.totalorder %s118, 1
            %s123 = sphi %s108, %s108
            %s124 = sphi [#allocation3], [#allocation3]
          $region58: #{tpu_custom_call.1} parent=54 // loop_header_branch
            %121 = sbr.rel (%p119) target = $region62
          $region59: #{tpu_custom_call.1} parent=54 // loop_body
            %v125 = vld [vmem:[%s123] sm:%s116]
            %126 = vst [vmem:[%s124] sm:%s116] %v125
            %v127 = vld [vmem:[%s123 + $0x10] sm:%s116]
            %128 = vst [vmem:[%s124 + $0x8] sm:%s116] %v127
            %v129 = vld [vmem:[%s123 + $0x20] sm:%s116]
            %130 = vst [vmem:[%s124 + $0x10] sm:%s116] %v129
            %v131 = vld [vmem:[%s123 + $0x30] sm:%s116]
            %132 = vst [vmem:[%s124 + $0x18] sm:%s116] %v131
            %v133 = vld [vmem:[%s123 + $0x40] sm:%s116]
            %134 = vst [vmem:[%s124 + $0x20] sm:%s116] %v133
            %v135 = vld [vmem:[%s123 + $0x50] sm:%s116]
            %136 = vst [vmem:[%s124 + $0x28] sm:%s116] %v135
            %v137 = vld [vmem:[%s123 + $0x60] sm:%s116]
            %138 = vst [vmem:[%s124 + $0x30] sm:%s116] %v137
            %v139 = vld [vmem:[%s123 + $0x70] sm:%s116]
            %140 = vst [vmem:[%s124 + $0x38] sm:%s116] %v139
            %v141 = vld [vmem:[%s123 + $0x80] sm:%s116]
            %142 = vst [vmem:[%s124 + $0x40] sm:%s116] %v141
            %v143 = vld [vmem:[%s123 + $0x90] sm:%s116]
            %144 = vst [vmem:[%s124 + $0x48] sm:%s116] %v143
            %v145 = vld [vmem:[%s123 + $0xa0] sm:%s116]
            %146 = vst [vmem:[%s124 + $0x50] sm:%s116] %v145
            %v147 = vld [vmem:[%s123 + $0xb0] sm:%s116]
            %148 = vst [vmem:[%s124 + $0x58] sm:%s116] %v147
            %v149 = vld [vmem:[%s123 + $0xc0] sm:%s116]
            %150 = vst [vmem:[%s124 + $0x60] sm:%s116] %v149
            %v151 = vld [vmem:[%s123 + $0xd0] sm:%s116]
            %152 = vst [vmem:[%s124 + $0x68] sm:%s116] %v151
            %v153 = vld [vmem:[%s123 + $0xe0] sm:%s116]
            %154 = vst [vmem:[%s124 + $0x70] sm:%s116] %v153
            %v155 = vld [vmem:[%s123 + $0xf0] sm:%s116]
            %156 = vst [vmem:[%s124 + $0x78] sm:%s116] %v155
          $region60: #{tpu_custom_call.1} parent=54 // loop_footer
            %s122 = sadd.s32 1, %s118
          $region61: #{tpu_custom_call.1} parent=54 // loop_footer_branch
            %117 = sbr.rel target = $region57
          $region62: #{tpu_custom_call.1} parent=54 // loop_exit
            _
        $region55: #{tpu_custom_call.1} parent=46 // pred_fallthru
          _
      $region47: #{tpu_custom_call.1} parent=42 // pred_fallthru
        _
      %201 = vnop
    $region43: #{tpu_custom_call.1} parent=1 // pred_fallthru
      _
    // Predicated region
    $region78: #{tpu_custom_call.1} parent=1 // pred_check
      _
    $region79: #{tpu_custom_call.1} parent=1 // pred_check_branch
      %203 = sbr.rel (0) target = $region81
    $region80: #{tpu_custom_call.1} parent=1 // pred_region
      _
    $region81: #{tpu_custom_call.1} parent=1 // pred_fallthru
      _
    // Predicated region
    $region82: #{tpu_custom_call.1} parent=1 // pred_check
      _
    $region83: #{tpu_custom_call.1} parent=1 // pred_check_branch
      %205 = sbr.rel (0) target = $region85
    $region84: #{tpu_custom_call.1} parent=1 // pred_region
      _
    $region85: #{tpu_custom_call.1} parent=1 // pred_fallthru
      _
    // Predicated region
    $region86: #{tpu_custom_call.1} parent=1 // pred_check
      _
    $region87: #{tpu_custom_call.1} parent=1 // pred_check_branch
      %207 = sbr.rel (0) target = $region89
    $region88: #{tpu_custom_call.1} parent=1 // pred_region
      _
    $region89: #{tpu_custom_call.1} parent=1 // pred_fallthru
      _
    // Predicated region
    $region90: #{tpu_custom_call.1} parent=1 // pred_check
      _
    $region91: #{tpu_custom_call.1} parent=1 // pred_check_branch
      %209 = sbr.rel (0) target = $region93
    $region92: #{tpu_custom_call.1} parent=1 // pred_region
      _
    $region93: #{tpu_custom_call.1} parent=1 // pred_fallthru
      _
    // Predicated region
    $region94: #{tpu_custom_call.1} parent=1 // pred_check
      _
    $region95: #{tpu_custom_call.1} parent=1 // pred_check_branch
      %211 = sbr.rel (0) target = $region97
    $region96: #{tpu_custom_call.1} parent=1 // pred_region
      _
    $region97: #{tpu_custom_call.1} parent=1 // pred_fallthru
      _
    // Predicated region
    $region98: #{tpu_custom_call.1} parent=1 // pred_check
      _
    $region99: #{tpu_custom_call.1} parent=1 // pred_check_branch
      %213 = sbr.rel (0) target = $region101
    $region100: #{tpu_custom_call.1} parent=1 // pred_region
      _
    $region101: #{tpu_custom_call.1} parent=1 // pred_fallthru
      _
    %v214 = vld [vmem:[#allocation2] sm:$0xff]
    %v215 = vld [vmem:[#allocation2 + $0x8] sm:$0xff]
    %v216 = vld [vmem:[#allocation2 + $0x10] sm:$0xff]
    %v217 = vld [vmem:[#allocation2 + $0x18] sm:$0xff]
    %v218 = vld [vmem:[#allocation2 + $0x20] sm:$0xff]
    %v219 = vld [vmem:[#allocation2 + $0x28] sm:$0xff]
    %v220 = vld [vmem:[#allocation2 + $0x30] sm:$0xff]
    %v221 = vld [vmem:[#allocation2 + $0x38] sm:$0xff]
    %v222 = vld [vmem:[#allocation2 + $0x40] sm:$0xff]
    %v223 = vld [vmem:[#allocation2 + $0x48] sm:$0xff]
    %v224 = vld [vmem:[#allocation2 + $0x50] sm:$0xff]
    %v225 = vld [vmem:[#allocation2 + $0x58] sm:$0xff]
    %v226 = vld [vmem:[#allocation2 + $0x60] sm:$0xff]
    %v227 = vld [vmem:[#allocation2 + $0x68] sm:$0xff]
    %v228 = vld [vmem:[#allocation2 + $0x70] sm:$0xff]
    %v229 = vld [vmem:[#allocation2 + $0x78] sm:$0xff]
    %v230 = vld [vmem:[#allocation3] sm:$0xff]
    %v231 = vld [vmem:[#allocation3 + $0x8] sm:$0xff]
    %v232 = vld [vmem:[#allocation3 + $0x10] sm:$0xff]
    %v233 = vld [vmem:[#allocation3 + $0x18] sm:$0xff]
    %v234 = vld [vmem:[#allocation3 + $0x20] sm:$0xff]
    %v235 = vld [vmem:[#allocation3 + $0x28] sm:$0xff]
    %v236 = vld [vmem:[#allocation3 + $0x30] sm:$0xff]
    %v237 = vld [vmem:[#allocation3 + $0x38] sm:$0xff]
    %v238 = vld [vmem:[#allocation3 + $0x40] sm:$0xff]
    %v239 = vld [vmem:[#allocation3 + $0x48] sm:$0xff]
    %v240 = vld [vmem:[#allocation3 + $0x50] sm:$0xff]
    %v241 = vld [vmem:[#allocation3 + $0x58] sm:$0xff]
    %v242 = vld [vmem:[#allocation3 + $0x60] sm:$0xff]
    %v243 = vld [vmem:[#allocation3 + $0x68] sm:$0xff]
    %v244 = vld [vmem:[#allocation3 + $0x70] sm:$0xff]
    %v245 = vld [vmem:[#allocation3 + $0x78] sm:$0xff]
    %v246 = vld [vmem:[%s2] sm:$0xff]
    %v247 = vld [vmem:[%s3] sm:$0xff]
    %vm248 = vcmask 64512
    %v250 = vsel %vm248, %v230, 0
    %v253 = vsel %vm248, %v231, 0
    %v256 = vsel %vm248, %v232, 0
    %v259 = vsel %vm248, %v233, 0
    %v262 = vsel %vm248, %v234, 0
    %v265 = vsel %vm248, %v235, 0
    %v268 = vsel %vm248, %v236, 0
    %v271 = vsel %vm248, %v237, 0
    %v274 = vsel %vm248, %v238, 0
    %v277 = vsel %vm248, %v239, 0
    %v280 = vsel %vm248, %v240, 0
    %v283 = vsel %vm248, %v241, 0
    %v286 = vsel %vm248, %v242, 0
    %v289 = vsel %vm248, %v243, 0
    %v292 = vsel %vm248, %v244, 0
    %v295 = vsel %vm248, %v245, 0
    %297 = vmatprep.subr.mxu0 0.0
    %298 = vmatpush1.msra.mxu0 0.0
    %299 = vmatprep.subr.mxu0 0.0
    %300 = vmatpush1.msra.mxu0 0.0
    %301 = vmatprep.subr.mxu0 0.0
    %302 = vmatpush1.msra.mxu0 0.0
    %303 = vmatprep.subr.mxu0 0.0
    %304 = vmatpush1.msra.mxu0 0.0
    %305 = vmatprep.subr.mxu0 0.0
    %306 = vmatpush1.msra.mxu0 0.0
    %307 = vmatprep.subr.mxu0 0.0
    %308 = vmatpush1.msra.mxu0 0.0
    %309 = vmatprep.subr.mxu0 0.0
    %310 = vmatpush1.msra.mxu0 0.0
    %311 = vmatprep.subr.mxu0 0.0
    %312 = vmatpush1.msra.mxu0 0.0
    %313 = vmatprep.subr.mxu0 0.0
    %314 = vmatpush1.msra.mxu0 0.0
    %315 = vmatprep.subr.mxu0 0.0
    %316 = vmatpush1.msra.mxu0 0.0
    %317 = vmatprep.subr.mxu0 0.0
    %318 = vmatpush1.msra.mxu0 0.0
    %319 = vmatprep.subr.mxu0 0.0
    %320 = vmatpush1.msra.mxu0 0.0
    %321 = vmatprep.subr.mxu0 0.0
    %322 = vmatpush1.msra.mxu0 0.0
    %323 = vmatprep.subr.mxu0 0.0
    %324 = vmatpush1.msra.mxu0 0.0
    %325 = vmatprep.subr.mxu0 0.0
    %326 = vmatpush1.msra.mxu0 0.0
    %327 = vmatprep.subr.mxu0 0.0
    %328 = vmatpush1.msra.mxu0 %v247
    %329 = vmatprep.subr.mxu0 0.0
    %330 = vmatpush2.msra.mxu0 0.0
    %331 = vmatprep.subr.mxu0 0.0
    %332 = vmatpush2.msra.mxu0 0.0
    %333 = vmatprep.subr.mxu0 0.0
    %334 = vmatpush2.msra.mxu0 0.0
    %335 = vmatprep.subr.mxu0 0.0
    %336 = vmatpush2.msra.mxu0 0.0
    %337 = vmatprep.subr.mxu0 0.0
    %338 = vmatpush2.msra.mxu0 0.0
    %339 = vmatprep.subr.mxu0 0.0
    %340 = vmatpush2.msra.mxu0 0.0
    %341 = vmatprep.subr.mxu0 0.0
    %342 = vmatpush2.msra.mxu0 0.0
    %343 = vmatprep.subr.mxu0 0.0
    %344 = vmatpush2.msra.mxu0 0.0
    %345 = vmatprep.subr.mxu0 0.0
    %346 = vmatpush2.msra.mxu0 0.0
    %347 = vmatprep.subr.mxu0 0.0
    %348 = vmatpush2.msra.mxu0 0.0
    %349 = vmatprep.subr.mxu0 0.0
    %350 = vmatpush2.msra.mxu0 0.0
    %351 = vmatprep.subr.mxu0 0.0
    %352 = vmatpush2.msra.mxu0 0.0
    %353 = vmatprep.subr.mxu0 0.0
    %354 = vmatpush2.msra.mxu0 0.0
    %355 = vmatprep.subr.mxu0 0.0
    %356 = vmatpush2.msra.mxu0 0.0
    %357 = vmatprep.subr.mxu0 0.0
    %358 = vmatpush2.msra.mxu0 0.0
    %359 = vmatprep.subr.mxu0 0.0
    %360 = vmatpush2.msra.mxu0 0.0
    %361 = vmatprep.mubr.f32.mxu0 0.0
    %362 = vmatmul.mubr.f32.gmra.mxu0 %v250
    %v363 = vpop.f32.mrf.mxu0
    %v364 = vadd.f32 0.0, %v363
    %v365 = vpop.f32.mrf.mxu0
    %366 = vmatprep.mubr.f32.mxu0 0.0
    %367 = vmatmul.mubr.f32.gmra.mxu0 %v253
    %v368 = vpop.f32.mrf.mxu0
    %v369 = vadd.f32 0.0, %v368
    %v370 = vpop.f32.mrf.mxu0
    %371 = vmatprep.mubr.f32.mxu0 0.0
    %372 = vmatmul.mubr.f32.gmra.mxu0 %v256
    %v373 = vpop.f32.mrf.mxu0
    %v374 = vadd.f32 0.0, %v373
    %v375 = vpop.f32.mrf.mxu0
    %376 = vmatprep.mubr.f32.mxu0 0.0
    %377 = vmatmul.mubr.f32.gmra.mxu0 %v259
    %v378 = vpop.f32.mrf.mxu0
    %v379 = vadd.f32 0.0, %v378
    %v380 = vpop.f32.mrf.mxu0
    %381 = vmatprep.mubr.f32.mxu0 0.0
    %382 = vmatmul.mubr.f32.gmra.mxu0 %v262
    %v383 = vpop.f32.mrf.mxu0
    %v384 = vadd.f32 0.0, %v383
    %v385 = vpop.f32.mrf.mxu0
    %386 = vmatprep.mubr.f32.mxu0 0.0
    %387 = vmatmul.mubr.f32.gmra.mxu0 %v265
    %v388 = vpop.f32.mrf.mxu0
    %v389 = vadd.f32 0.0, %v388
    %v390 = vpop.f32.mrf.mxu0
    %391 = vmatprep.mubr.f32.mxu0 0.0
    %392 = vmatmul.mubr.f32.gmra.mxu0 %v268
    %v393 = vpop.f32.mrf.mxu0
    %v394 = vadd.f32 0.0, %v393
    %v395 = vpop.f32.mrf.mxu0
    %396 = vmatprep.mubr.f32.mxu0 0.0
    %397 = vmatmul.mubr.f32.gmra.mxu0 %v271
    %v398 = vpop.f32.mrf.mxu0
    %v399 = vadd.f32 0.0, %v398
    %v400 = vpop.f32.mrf.mxu0
    %401 = vmatprep.mubr.f32.mxu0 0.0
    %402 = vmatmul.mubr.f32.gmra.mxu0 %v274
    %v403 = vpop.f32.mrf.mxu0
    %v404 = vadd.f32 0.0, %v403
    %v405 = vpop.f32.mrf.mxu0
    %406 = vmatprep.mubr.f32.mxu0 0.0
    %407 = vmatmul.mubr.f32.gmra.mxu0 %v277
    %v408 = vpop.f32.mrf.mxu0
    %v409 = vadd.f32 0.0, %v408
    %v410 = vpop.f32.mrf.mxu0
    %411 = vmatprep.mubr.f32.mxu0 0.0
    %412 = vmatmul.mubr.f32.gmra.mxu0 %v280
    %v413 = vpop.f32.mrf.mxu0
    %v414 = vadd.f32 0.0, %v413
    %v415 = vpop.f32.mrf.mxu0
    %416 = vmatprep.mubr.f32.mxu0 0.0
    %417 = vmatmul.mubr.f32.gmra.mxu0 %v283
    %v418 = vpop.f32.mrf.mxu0
    %v419 = vadd.f32 0.0, %v418
    %v420 = vpop.f32.mrf.mxu0
    %421 = vmatprep.mubr.f32.mxu0 0.0
    %422 = vmatmul.mubr.f32.gmra.mxu0 %v286
    %v423 = vpop.f32.mrf.mxu0
    %v424 = vadd.f32 0.0, %v423
    %v425 = vpop.f32.mrf.mxu0
    %426 = vmatprep.mubr.f32.mxu0 0.0
    %427 = vmatmul.mubr.f32.gmra.mxu0 %v289
    %v428 = vpop.f32.mrf.mxu0
    %v429 = vadd.f32 0.0, %v428
    %v430 = vpop.f32.mrf.mxu0
    %431 = vmatprep.mubr.f32.mxu0 0.0
    %432 = vmatmul.mubr.f32.gmra.mxu0 %v292
    %v433 = vpop.f32.mrf.mxu0
    %v434 = vadd.f32 0.0, %v433
    %v435 = vpop.f32.mrf.mxu0
    %436 = vmatprep.mubr.f32.mxu0 0.0
    %437 = vmatmul.mubr.f32.gmra.mxu0 %v295
    %v438 = vpop.f32.mrf.mxu0
    %v439 = vadd.f32 0.0, %v438
    %v440 = vpop.f32.mrf.mxu0
    %441 = vdwg.mxu0
    %v443 = vsel %vm248, %v214, 0
    %v446 = vsel %vm248, %v215, 0
    %v449 = vsel %vm248, %v216, 0
    %v452 = vsel %vm248, %v217, 0
    %v455 = vsel %vm248, %v218, 0
    %v458 = vsel %vm248, %v219, 0
    %v461 = vsel %vm248, %v220, 0
    %v464 = vsel %vm248, %v221, 0
    %v467 = vsel %vm248, %v222, 0
    %v470 = vsel %vm248, %v223, 0
    %v473 = vsel %vm248, %v224, 0
    %v476 = vsel %vm248, %v225, 0
    %v479 = vsel %vm248, %v226, 0
    %v482 = vsel %vm248, %v227, 0
    %v485 = vsel %vm248, %v228, 0
    %v488 = vsel %vm248, %v229, 0
    %490 = vmatprep.subr.mxu0 0.0
    %491 = vmatpush1.msra.mxu0 0.0
    %492 = vmatprep.subr.mxu0 0.0
    %493 = vmatpush1.msra.mxu0 0.0
    %494 = vmatprep.subr.mxu0 0.0
    %495 = vmatpush1.msra.mxu0 0.0
    %496 = vmatprep.subr.mxu0 0.0
    %497 = vmatpush1.msra.mxu0 0.0
    %498 = vmatprep.subr.mxu0 0.0
    %499 = vmatpush1.msra.mxu0 0.0
    %500 = vmatprep.subr.mxu0 0.0
    %501 = vmatpush1.msra.mxu0 0.0
    %502 = vmatprep.subr.mxu0 0.0
    %503 = vmatpush1.msra.mxu0 0.0
    %504 = vmatprep.subr.mxu0 0.0
    %505 = vmatpush1.msra.mxu0 0.0
    %506 = vmatprep.subr.mxu0 0.0
    %507 = vmatpush1.msra.mxu0 0.0
    %508 = vmatprep.subr.mxu0 0.0
    %509 = vmatpush1.msra.mxu0 0.0
    %510 = vmatprep.subr.mxu0 0.0
    %511 = vmatpush1.msra.mxu0 0.0
    %512 = vmatprep.subr.mxu0 0.0
    %513 = vmatpush1.msra.mxu0 0.0
    %514 = vmatprep.subr.mxu0 0.0
    %515 = vmatpush1.msra.mxu0 0.0
    %516 = vmatprep.subr.mxu0 0.0
    %517 = vmatpush1.msra.mxu0 0.0
    %518 = vmatprep.subr.mxu0 0.0
    %519 = vmatpush1.msra.mxu0 0.0
    %520 = vmatprep.subr.mxu0 0.0
    %521 = vmatpush1.msra.mxu0 %v246
    %522 = vmatprep.subr.mxu0 0.0
    %523 = vmatpush2.msra.mxu0 0.0
    %524 = vmatprep.subr.mxu0 0.0
    %525 = vmatpush2.msra.mxu0 0.0
    %526 = vmatprep.subr.mxu0 0.0
    %527 = vmatpush2.msra.mxu0 0.0
    %528 = vmatprep.subr.mxu0 0.0
    %529 = vmatpush2.msra.mxu0 0.0
    %530 = vmatprep.subr.mxu0 0.0
    %531 = vmatpush2.msra.mxu0 0.0
    %532 = vmatprep.subr.mxu0 0.0
    %533 = vmatpush2.msra.mxu0 0.0
    %534 = vmatprep.subr.mxu0 0.0
    %535 = vmatpush2.msra.mxu0 0.0
    %536 = vmatprep.subr.mxu0 0.0
    %537 = vmatpush2.msra.mxu0 0.0
    %538 = vmatprep.subr.mxu0 0.0
    %539 = vmatpush2.msra.mxu0 0.0
    %540 = vmatprep.subr.mxu0 0.0
    %541 = vmatpush2.msra.mxu0 0.0
    %542 = vmatprep.subr.mxu0 0.0
    %543 = vmatpush2.msra.mxu0 0.0
    %544 = vmatprep.subr.mxu0 0.0
    %545 = vmatpush2.msra.mxu0 0.0
    %546 = vmatprep.subr.mxu0 0.0
    %547 = vmatpush2.msra.mxu0 0.0
    %548 = vmatprep.subr.mxu0 0.0
    %549 = vmatpush2.msra.mxu0 0.0
    %550 = vmatprep.subr.mxu0 0.0
    %551 = vmatpush2.msra.mxu0 0.0
    %552 = vmatprep.subr.mxu0 0.0
    %553 = vmatpush2.msra.mxu0 0.0
    %554 = vmatprep.mubr.f32.mxu0 0.0
    %555 = vmatmul.mubr.f32.gmra.mxu0 %v443
    %v556 = vpop.f32.mrf.mxu0
    %v557 = vadd.f32 %v364, %v556
    %v558 = vpop.f32.mrf.mxu0
    %559 = vmatprep.mubr.f32.mxu0 0.0
    %560 = vmatmul.mubr.f32.gmra.mxu0 %v446
    %v561 = vpop.f32.mrf.mxu0
    %v562 = vadd.f32 %v369, %v561
    %v563 = vpop.f32.mrf.mxu0
    %564 = vmatprep.mubr.f32.mxu0 0.0
    %565 = vmatmul.mubr.f32.gmra.mxu0 %v449
    %v566 = vpop.f32.mrf.mxu0
    %v567 = vadd.f32 %v374, %v566
    %v568 = vpop.f32.mrf.mxu0
    %569 = vmatprep.mubr.f32.mxu0 0.0
    %570 = vmatmul.mubr.f32.gmra.mxu0 %v452
    %v571 = vpop.f32.mrf.mxu0
    %v572 = vadd.f32 %v379, %v571
    %v573 = vpop.f32.mrf.mxu0
    %574 = vmatprep.mubr.f32.mxu0 0.0
    %575 = vmatmul.mubr.f32.gmra.mxu0 %v455
    %v576 = vpop.f32.mrf.mxu0
    %v577 = vadd.f32 %v384, %v576
    %v578 = vpop.f32.mrf.mxu0
    %579 = vmatprep.mubr.f32.mxu0 0.0
    %580 = vmatmul.mubr.f32.gmra.mxu0 %v458
    %v581 = vpop.f32.mrf.mxu0
    %v582 = vadd.f32 %v389, %v581
    %v583 = vpop.f32.mrf.mxu0
    %584 = vmatprep.mubr.f32.mxu0 0.0
    %585 = vmatmul.mubr.f32.gmra.mxu0 %v461
    %v586 = vpop.f32.mrf.mxu0
    %v587 = vadd.f32 %v394, %v586
    %v588 = vpop.f32.mrf.mxu0
    %589 = vmatprep.mubr.f32.mxu0 0.0
    %590 = vmatmul.mubr.f32.gmra.mxu0 %v464
    %v591 = vpop.f32.mrf.mxu0
    %v592 = vadd.f32 %v399, %v591
    %v593 = vpop.f32.mrf.mxu0
    %594 = vmatprep.mubr.f32.mxu0 0.0
    %595 = vmatmul.mubr.f32.gmra.mxu0 %v467
    %v596 = vpop.f32.mrf.mxu0
    %v597 = vadd.f32 %v404, %v596
    %v598 = vpop.f32.mrf.mxu0
    %599 = vmatprep.mubr.f32.mxu0 0.0
    %600 = vmatmul.mubr.f32.gmra.mxu0 %v470
    %v601 = vpop.f32.mrf.mxu0
    %v602 = vadd.f32 %v409, %v601
    %v603 = vpop.f32.mrf.mxu0
    %604 = vmatprep.mubr.f32.mxu0 0.0
    %605 = vmatmul.mubr.f32.gmra.mxu0 %v473
    %v606 = vpop.f32.mrf.mxu0
    %v607 = vadd.f32 %v414, %v606
    %v608 = vpop.f32.mrf.mxu0
    %609 = vmatprep.mubr.f32.mxu0 0.0
    %610 = vmatmul.mubr.f32.gmra.mxu0 %v476
    %v611 = vpop.f32.mrf.mxu0
    %v612 = vadd.f32 %v419, %v611
    %v613 = vpop.f32.mrf.mxu0
    %614 = vmatprep.mubr.f32.mxu0 0.0
    %615 = vmatmul.mubr.f32.gmra.mxu0 %v479
    %v616 = vpop.f32.mrf.mxu0
    %v617 = vadd.f32 %v424, %v616
    %v618 = vpop.f32.mrf.mxu0
    %619 = vmatprep.mubr.f32.mxu0 0.0
    %620 = vmatmul.mubr.f32.gmra.mxu0 %v482
    %v621 = vpop.f32.mrf.mxu0
    %v622 = vadd.f32 %v429, %v621
    %v623 = vpop.f32.mrf.mxu0
    %624 = vmatprep.mubr.f32.mxu0 0.0
    %625 = vmatmul.mubr.f32.gmra.mxu0 %v485
    %v626 = vpop.f32.mrf.mxu0
    %v627 = vadd.f32 %v434, %v626
    %v628 = vpop.f32.mrf.mxu0
    %629 = vmatprep.mubr.f32.mxu0 0.0
    %630 = vmatmul.mubr.f32.gmra.mxu0 %v488
    %v631 = vpop.f32.mrf.mxu0
    %v632 = vadd.f32 %v439, %v631
    %v633 = vpop.f32.mrf.mxu0
    %634 = vdwg.mxu0
    %v635 = vsel %vm248, %v214, 0.0
    %636 = vadd.xlane.f32.xlu0 %v635
    %v637 = vpop.xlane.xlu0 %636
    %v638 = vsel %vm248, %v215, 0.0
    %639 = vadd.xlane.f32.xlu0 %v638
    %v640 = vpop.xlane.xlu0 %639
    %v641 = vsel %vm248, %v216, 0.0
    %642 = vadd.xlane.f32.xlu0 %v641
    %v643 = vpop.xlane.xlu0 %642
    %v644 = vsel %vm248, %v217, 0.0
    %645 = vadd.xlane.f32.xlu0 %v644
    %v646 = vpop.xlane.xlu0 %645
    %v647 = vsel %vm248, %v218, 0.0
    %648 = vadd.xlane.f32.xlu0 %v647
    %v649 = vpop.xlane.xlu0 %648
    %v650 = vsel %vm248, %v219, 0.0
    %651 = vadd.xlane.f32.xlu0 %v650
    %v652 = vpop.xlane.xlu0 %651
    %v653 = vsel %vm248, %v220, 0.0
    %654 = vadd.xlane.f32.xlu0 %v653
    %v655 = vpop.xlane.xlu0 %654
    %v656 = vsel %vm248, %v221, 0.0
    %657 = vadd.xlane.f32.xlu0 %v656
    %v658 = vpop.xlane.xlu0 %657
    %v659 = vsel %vm248, %v222, 0.0
    %660 = vadd.xlane.f32.xlu0 %v659
    %v661 = vpop.xlane.xlu0 %660
    %v662 = vsel %vm248, %v223, 0.0
    %663 = vadd.xlane.f32.xlu0 %v662
    %v664 = vpop.xlane.xlu0 %663
    %v665 = vsel %vm248, %v224, 0.0
    %666 = vadd.xlane.f32.xlu0 %v665
    %v667 = vpop.xlane.xlu0 %666
    %v668 = vsel %vm248, %v225, 0.0
    %669 = vadd.xlane.f32.xlu0 %v668
    %v670 = vpop.xlane.xlu0 %669
    %v671 = vsel %vm248, %v226, 0.0
    %672 = vadd.xlane.f32.xlu0 %v671
    %v673 = vpop.xlane.xlu0 %672
    %v674 = vsel %vm248, %v227, 0.0
    %675 = vadd.xlane.f32.xlu0 %v674
    %v676 = vpop.xlane.xlu0 %675
    %v677 = vsel %vm248, %v228, 0.0
    %678 = vadd.xlane.f32.xlu0 %v677
    %v679 = vpop.xlane.xlu0 %678
    %v680 = vsel %vm248, %v229, 0.0
    %681 = vadd.xlane.f32.xlu0 %v680
    %v682 = vpop.xlane.xlu0 %681
    %v683 = vsel %vm248, %v230, 0.0
    %684 = vadd.xlane.f32.xlu0 %v683
    %v685 = vpop.xlane.xlu0 %684
    %v686 = vsel %vm248, %v231, 0.0
    %687 = vadd.xlane.f32.xlu0 %v686
    %v688 = vpop.xlane.xlu0 %687
    %v689 = vsel %vm248, %v232, 0.0
    %690 = vadd.xlane.f32.xlu0 %v689
    %v691 = vpop.xlane.xlu0 %690
    %v692 = vsel %vm248, %v233, 0.0
    %693 = vadd.xlane.f32.xlu0 %v692
    %v694 = vpop.xlane.xlu0 %693
    %v695 = vsel %vm248, %v234, 0.0
    %696 = vadd.xlane.f32.xlu0 %v695
    %v697 = vpop.xlane.xlu0 %696
    %v698 = vsel %vm248, %v235, 0.0
    %699 = vadd.xlane.f32.xlu0 %v698
    %v700 = vpop.xlane.xlu0 %699
    %v701 = vsel %vm248, %v236, 0.0
    %702 = vadd.xlane.f32.xlu0 %v701
    %v703 = vpop.xlane.xlu0 %702
    %v704 = vsel %vm248, %v237, 0.0
    %705 = vadd.xlane.f32.xlu0 %v704
    %v706 = vpop.xlane.xlu0 %705
    %v707 = vsel %vm248, %v238, 0.0
    %708 = vadd.xlane.f32.xlu0 %v707
    %v709 = vpop.xlane.xlu0 %708
    %v710 = vsel %vm248, %v239, 0.0
    %711 = vadd.xlane.f32.xlu0 %v710
    %v712 = vpop.xlane.xlu0 %711
    %v713 = vsel %vm248, %v240, 0.0
    %714 = vadd.xlane.f32.xlu0 %v713
    %v715 = vpop.xlane.xlu0 %714
    %v716 = vsel %vm248, %v241, 0.0
    %717 = vadd.xlane.f32.xlu0 %v716
    %v718 = vpop.xlane.xlu0 %717
    %v719 = vsel %vm248, %v242, 0.0
    %720 = vadd.xlane.f32.xlu0 %v719
    %v721 = vpop.xlane.xlu0 %720
    %v722 = vsel %vm248, %v243, 0.0
    %723 = vadd.xlane.f32.xlu0 %v722
    %v724 = vpop.xlane.xlu0 %723
    %v725 = vsel %vm248, %v244, 0.0
    %726 = vadd.xlane.f32.xlu0 %v725
    %v727 = vpop.xlane.xlu0 %726
    %v728 = vsel %vm248, %v245, 0.0
    %729 = vadd.xlane.f32.xlu0 %v728
    %v730 = vpop.xlane.xlu0 %729
    %v731 = vadd.f32 %v637, %v685
    %v732 = vadd.f32 %v640, %v688
    %v733 = vadd.f32 %v643, %v691
    %v734 = vadd.f32 %v646, %v694
    %v735 = vadd.f32 %v649, %v697
    %v736 = vadd.f32 %v652, %v700
    %v737 = vadd.f32 %v655, %v703
    %v738 = vadd.f32 %v658, %v706
    %v739 = vadd.f32 %v661, %v709
    %v740 = vadd.f32 %v664, %v712
    %v741 = vadd.f32 %v667, %v715
    %v742 = vadd.f32 %v670, %v718
    %v743 = vadd.f32 %v673, %v721
    %v744 = vadd.f32 %v676, %v724
    %v745 = vadd.f32 %v679, %v727
    %v746 = vadd.f32 %v682, %v730
    %v747 = vmul.f32 %v214, %v214
    %v748 = vmul.f32 %v215, %v215
    %v749 = vmul.f32 %v216, %v216
    %v750 = vmul.f32 %v217, %v217
    %v751 = vmul.f32 %v218, %v218
    %v752 = vmul.f32 %v219, %v219
    %v753 = vmul.f32 %v220, %v220
    %v754 = vmul.f32 %v221, %v221
    %v755 = vmul.f32 %v222, %v222
    %v756 = vmul.f32 %v223, %v223
    %v757 = vmul.f32 %v224, %v224
    %v758 = vmul.f32 %v225, %v225
    %v759 = vmul.f32 %v226, %v226
    %v760 = vmul.f32 %v227, %v227
    %v761 = vmul.f32 %v228, %v228
    %v762 = vmul.f32 %v229, %v229
    %v763 = vsel %vm248, %v747, 0.0
    %764 = vadd.xlane.f32.xlu0 %v763
    %v765 = vpop.xlane.xlu0 %764
    %v766 = vsel %vm248, %v748, 0.0
    %767 = vadd.xlane.f32.xlu0 %v766
    %v768 = vpop.xlane.xlu0 %767
    %v769 = vsel %vm248, %v749, 0.0
    %770 = vadd.xlane.f32.xlu0 %v769
    %v771 = vpop.xlane.xlu0 %770
    %v772 = vsel %vm248, %v750, 0.0
    %773 = vadd.xlane.f32.xlu0 %v772
    %v774 = vpop.xlane.xlu0 %773
    %v775 = vsel %vm248, %v751, 0.0
    %776 = vadd.xlane.f32.xlu0 %v775
    %v777 = vpop.xlane.xlu0 %776
    %v778 = vsel %vm248, %v752, 0.0
    %779 = vadd.xlane.f32.xlu0 %v778
    %v780 = vpop.xlane.xlu0 %779
    %v781 = vsel %vm248, %v753, 0.0
    %782 = vadd.xlane.f32.xlu0 %v781
    %v783 = vpop.xlane.xlu0 %782
    %v784 = vsel %vm248, %v754, 0.0
    %785 = vadd.xlane.f32.xlu0 %v784
    %v786 = vpop.xlane.xlu0 %785
    %v787 = vsel %vm248, %v755, 0.0
    %788 = vadd.xlane.f32.xlu0 %v787
    %v789 = vpop.xlane.xlu0 %788
    %v790 = vsel %vm248, %v756, 0.0
    %791 = vadd.xlane.f32.xlu0 %v790
    %v792 = vpop.xlane.xlu0 %791
    %v793 = vsel %vm248, %v757, 0.0
    %794 = vadd.xlane.f32.xlu0 %v793
    %v795 = vpop.xlane.xlu0 %794
    %v796 = vsel %vm248, %v758, 0.0
    %797 = vadd.xlane.f32.xlu0 %v796
    %v798 = vpop.xlane.xlu0 %797
    %v799 = vsel %vm248, %v759, 0.0
    %800 = vadd.xlane.f32.xlu0 %v799
    %v801 = vpop.xlane.xlu0 %800
    %v802 = vsel %vm248, %v760, 0.0
    %803 = vadd.xlane.f32.xlu0 %v802
    %v804 = vpop.xlane.xlu0 %803
    %v805 = vsel %vm248, %v761, 0.0
    %806 = vadd.xlane.f32.xlu0 %v805
    %v807 = vpop.xlane.xlu0 %806
    %v808 = vsel %vm248, %v762, 0.0
    %809 = vadd.xlane.f32.xlu0 %v808
    %v810 = vpop.xlane.xlu0 %809
    %v811 = vmul.f32 %v230, %v230
    %v812 = vmul.f32 %v231, %v231
    %v813 = vmul.f32 %v232, %v232
    %v814 = vmul.f32 %v233, %v233
    %v815 = vmul.f32 %v234, %v234
    %v816 = vmul.f32 %v235, %v235
    %v817 = vmul.f32 %v236, %v236
    %v818 = vmul.f32 %v237, %v237
    %v819 = vmul.f32 %v238, %v238
    %v820 = vmul.f32 %v239, %v239
    %v821 = vmul.f32 %v240, %v240
    %v822 = vmul.f32 %v241, %v241
    %v823 = vmul.f32 %v242, %v242
    %v824 = vmul.f32 %v243, %v243
    %v825 = vmul.f32 %v244, %v244
    %v826 = vmul.f32 %v245, %v245
    %v827 = vsel %vm248, %v811, 0.0
    %828 = vadd.xlane.f32.xlu0 %v827
    %v829 = vpop.xlane.xlu0 %828
    %v830 = vsel %vm248, %v812, 0.0
    %831 = vadd.xlane.f32.xlu0 %v830
    %v832 = vpop.xlane.xlu0 %831
    %v833 = vsel %vm248, %v813, 0.0
    %834 = vadd.xlane.f32.xlu0 %v833
    %v835 = vpop.xlane.xlu0 %834
    %v836 = vsel %vm248, %v814, 0.0
    %837 = vadd.xlane.f32.xlu0 %v836
    %v838 = vpop.xlane.xlu0 %837
    %v839 = vsel %vm248, %v815, 0.0
    %840 = vadd.xlane.f32.xlu0 %v839
    %v841 = vpop.xlane.xlu0 %840
    %v842 = vsel %vm248, %v816, 0.0
    %843 = vadd.xlane.f32.xlu0 %v842
    %v844 = vpop.xlane.xlu0 %843
    %v845 = vsel %vm248, %v817, 0.0
    %846 = vadd.xlane.f32.xlu0 %v845
    %v847 = vpop.xlane.xlu0 %846
    %v848 = vsel %vm248, %v818, 0.0
    %849 = vadd.xlane.f32.xlu0 %v848
    %v850 = vpop.xlane.xlu0 %849
    %v851 = vsel %vm248, %v819, 0.0
    %852 = vadd.xlane.f32.xlu0 %v851
    %v853 = vpop.xlane.xlu0 %852
    %v854 = vsel %vm248, %v820, 0.0
    %855 = vadd.xlane.f32.xlu0 %v854
    %v856 = vpop.xlane.xlu0 %855
    %v857 = vsel %vm248, %v821, 0.0
    %858 = vadd.xlane.f32.xlu0 %v857
    %v859 = vpop.xlane.xlu0 %858
    %v860 = vsel %vm248, %v822, 0.0
    %861 = vadd.xlane.f32.xlu0 %v860
    %v862 = vpop.xlane.xlu0 %861
    %v863 = vsel %vm248, %v823, 0.0
    %864 = vadd.xlane.f32.xlu0 %v863
    %v865 = vpop.xlane.xlu0 %864
    %v866 = vsel %vm248, %v824, 0.0
    %867 = vadd.xlane.f32.xlu0 %v866
    %v868 = vpop.xlane.xlu0 %867
    %v869 = vsel %vm248, %v825, 0.0
    %870 = vadd.xlane.f32.xlu0 %v869
    %v871 = vpop.xlane.xlu0 %870
    %v872 = vsel %vm248, %v826, 0.0
    %873 = vadd.xlane.f32.xlu0 %v872
    %v874 = vpop.xlane.xlu0 %873
    %v875 = vadd.f32 %v765, %v829
    %v876 = vadd.f32 %v768, %v832
    %v877 = vadd.f32 %v771, %v835
    %v878 = vadd.f32 %v774, %v838
    %v879 = vadd.f32 %v777, %v841
    %v880 = vadd.f32 %v780, %v844
    %v881 = vadd.f32 %v783, %v847
    %v882 = vadd.f32 %v786, %v850
    %v883 = vadd.f32 %v789, %v853
    %v884 = vadd.f32 %v792, %v856
    %v885 = vadd.f32 %v795, %v859
    %v886 = vadd.f32 %v798, %v862
    %v887 = vadd.f32 %v801, %v865
    %v888 = vadd.f32 %v804, %v868
    %v889 = vadd.f32 %v807, %v871
    %v890 = vadd.f32 %v810, %v874
    %v891 = vmul.f32 %v731, 0.0625
    %v892 = vmul.f32 %v732, 0.0625
    %v893 = vmul.f32 %v733, 0.0625
    %v894 = vmul.f32 %v734, 0.0625
    %v895 = vmul.f32 %v735, 0.0625
    %v896 = vmul.f32 %v736, 0.0625
    %v897 = vmul.f32 %v737, 0.0625
    %v898 = vmul.f32 %v738, 0.0625
    %v899 = vmul.f32 %v739, 0.0625
    %v900 = vmul.f32 %v740, 0.0625
    %v901 = vmul.f32 %v741, 0.0625
    %v902 = vmul.f32 %v742, 0.0625
    %v903 = vmul.f32 %v743, 0.0625
    %v904 = vmul.f32 %v744, 0.0625
    %v905 = vmul.f32 %v745, 0.0625
    %v906 = vmul.f32 %v746, 0.0625
    %v907 = vmul.f32 %v875, 0.0625
    %v908 = vmul.f32 %v876, 0.0625
    %v909 = vmul.f32 %v877, 0.0625
    %v910 = vmul.f32 %v878, 0.0625
    %v911 = vmul.f32 %v879, 0.0625
    %v912 = vmul.f32 %v880, 0.0625
    %v913 = vmul.f32 %v881, 0.0625
    %v914 = vmul.f32 %v882, 0.0625
    %v915 = vmul.f32 %v883, 0.0625
    %v916 = vmul.f32 %v884, 0.0625
    %v917 = vmul.f32 %v885, 0.0625
    %v918 = vmul.f32 %v886, 0.0625
    %v919 = vmul.f32 %v887, 0.0625
    %v920 = vmul.f32 %v888, 0.0625
    %v921 = vmul.f32 %v889, 0.0625
    %v922 = vmul.f32 %v890, 0.0625
    %v923 = vmul.f32 %v891, %v891
    %v924 = vmul.f32 %v892, %v892
    %v925 = vmul.f32 %v893, %v893
    %v926 = vmul.f32 %v894, %v894
    %v927 = vmul.f32 %v895, %v895
    %v928 = vmul.f32 %v896, %v896
    %v929 = vmul.f32 %v897, %v897
    %v930 = vmul.f32 %v898, %v898
    %v931 = vmul.f32 %v899, %v899
    %v932 = vmul.f32 %v900, %v900
    %v933 = vmul.f32 %v901, %v901
    %v934 = vmul.f32 %v902, %v902
    %v935 = vmul.f32 %v903, %v903
    %v936 = vmul.f32 %v904, %v904
    %v937 = vmul.f32 %v905, %v905
    %v938 = vmul.f32 %v906, %v906
    %v939 = vsub.f32 %v907, %v923
    %v940 = vsub.f32 %v908, %v924
    %v941 = vsub.f32 %v909, %v925
    %v942 = vsub.f32 %v910, %v926
    %v943 = vsub.f32 %v911, %v927
    %v944 = vsub.f32 %v912, %v928
    %v945 = vsub.f32 %v913, %v929
    %v946 = vsub.f32 %v914, %v930
    %v947 = vsub.f32 %v915, %v931
    %v948 = vsub.f32 %v916, %v932
    %v949 = vsub.f32 %v917, %v933
    %v950 = vsub.f32 %v918, %v934
    %v951 = vsub.f32 %v919, %v935
    %v952 = vsub.f32 %v920, %v936
    %v953 = vsub.f32 %v921, %v937
    %v954 = vsub.f32 %v922, %v938
    %v955 = vmax.f32 %v939, 0.0
    %v956 = vmax.f32 %v940, 0.0
    %v957 = vmax.f32 %v941, 0.0
    %v958 = vmax.f32 %v942, 0.0
    %v959 = vmax.f32 %v943, 0.0
    %v960 = vmax.f32 %v944, 0.0
    %v961 = vmax.f32 %v945, 0.0
    %v962 = vmax.f32 %v946, 0.0
    %v963 = vmax.f32 %v947, 0.0
    %v964 = vmax.f32 %v948, 0.0
    %v965 = vmax.f32 %v949, 0.0
    %v966 = vmax.f32 %v950, 0.0
    %v967 = vmax.f32 %v951, 0.0
    %v968 = vmax.f32 %v952, 0.0
    %v969 = vmax.f32 %v953, 0.0
    %v970 = vmax.f32 %v954, 0.0
    %v971 = vadd.f32 %v955, 1e-05
    %v972 = vadd.f32 %v956, 1e-05
    %v973 = vadd.f32 %v957, 1e-05
    %v974 = vadd.f32 %v958, 1e-05
    %v975 = vadd.f32 %v959, 1e-05
    %v976 = vadd.f32 %v960, 1e-05
    %v977 = vadd.f32 %v961, 1e-05
    %v978 = vadd.f32 %v962, 1e-05
    %v979 = vadd.f32 %v963, 1e-05
    %v980 = vadd.f32 %v964, 1e-05
    %v981 = vadd.f32 %v965, 1e-05
    %v982 = vadd.f32 %v966, 1e-05
    %v983 = vadd.f32 %v967, 1e-05
    %v984 = vadd.f32 %v968, 1e-05
    %v985 = vadd.f32 %v969, 1e-05
    %v986 = vadd.f32 %v970, 1e-05
    %v987 = vrsqrt.pop %v971
    %v988 = vrsqrt.pop %v972
    %v989 = vrsqrt.pop %v973
    %v990 = vrsqrt.pop %v974
    %v991 = vrsqrt.pop %v975
    %v992 = vrsqrt.pop %v976
    %v993 = vrsqrt.pop %v977
    %v994 = vrsqrt.pop %v978
    %v995 = vrsqrt.pop %v979
    %v996 = vrsqrt.pop %v980
    %v997 = vrsqrt.pop %v981
    %v998 = vrsqrt.pop %v982
    %v999 = vrsqrt.pop %v983
    %v1000 = vrsqrt.pop %v984
    %v1001 = vrsqrt.pop %v985
    %v1002 = vrsqrt.pop %v986
    %v1003 = vld [vmem:[%s4] sm:$0x1]
    %v1005 = vlaneseq
    %v1006 = vshrl.u32 %v1005, 7
    %v1007 = vsub.s32 0, %v1006
    %v1008 = vrot.slane %v1003, %v1007
    %v1010 = vmul.f32 %v891, %v1008
    %v1011 = vmul.f32 %v892, %v1008
    %v1012 = vmul.f32 %v893, %v1008
    %v1013 = vmul.f32 %v894, %v1008
    %v1014 = vmul.f32 %v895, %v1008
    %v1015 = vmul.f32 %v896, %v1008
    %v1016 = vmul.f32 %v897, %v1008
    %v1017 = vmul.f32 %v898, %v1008
    %v1018 = vmul.f32 %v899, %v1008
    %v1019 = vmul.f32 %v900, %v1008
    %v1020 = vmul.f32 %v901, %v1008
    %v1021 = vmul.f32 %v902, %v1008
    %v1022 = vmul.f32 %v903, %v1008
    %v1023 = vmul.f32 %v904, %v1008
    %v1024 = vmul.f32 %v905, %v1008
    %v1025 = vmul.f32 %v906, %v1008
    %v1026 = vsub.f32 %v557, %v1010
    %v1027 = vsub.f32 %v562, %v1011
    %v1028 = vsub.f32 %v567, %v1012
    %v1029 = vsub.f32 %v572, %v1013
    %v1030 = vsub.f32 %v577, %v1014
    %v1031 = vsub.f32 %v582, %v1015
    %v1032 = vsub.f32 %v587, %v1016
    %v1033 = vsub.f32 %v592, %v1017
    %v1034 = vsub.f32 %v597, %v1018
    %v1035 = vsub.f32 %v602, %v1019
    %v1036 = vsub.f32 %v607, %v1020
    %v1037 = vsub.f32 %v612, %v1021
    %v1038 = vsub.f32 %v617, %v1022
    %v1039 = vsub.f32 %v622, %v1023
    %v1040 = vsub.f32 %v627, %v1024
    %v1041 = vsub.f32 %v632, %v1025
    %v1042 = vmul.f32 %v1026, %v987
    %v1043 = vmul.f32 %v1027, %v988
    %v1044 = vmul.f32 %v1028, %v989
    %v1045 = vmul.f32 %v1029, %v990
    %v1046 = vmul.f32 %v1030, %v991
    %v1047 = vmul.f32 %v1031, %v992
    %v1048 = vmul.f32 %v1032, %v993
    %v1049 = vmul.f32 %v1033, %v994
    %v1050 = vmul.f32 %v1034, %v995
    %v1051 = vmul.f32 %v1035, %v996
    %v1052 = vmul.f32 %v1036, %v997
    %v1053 = vmul.f32 %v1037, %v998
    %v1054 = vmul.f32 %v1038, %v999
    %v1055 = vmul.f32 %v1039, %v1000
    %v1056 = vmul.f32 %v1040, %v1001
    %v1057 = vmul.f32 %v1041, %v1002
    %v1058 = vld [vmem:[%s5] sm:$0x1]
    %v1060 = vlaneseq
    %v1061 = vshrl.u32 %v1060, 7
    %v1062 = vsub.s32 0, %v1061
    %v1063 = vrot.slane %v1058, %v1062
    %v1065 = vadd.f32 %v1042, %v1063
    %v1066 = vadd.f32 %v1043, %v1063
    %v1067 = vadd.f32 %v1044, %v1063
    %v1068 = vadd.f32 %v1045, %v1063
    %v1069 = vadd.f32 %v1046, %v1063
    %v1070 = vadd.f32 %v1047, %v1063
    %v1071 = vadd.f32 %v1048, %v1063
    %v1072 = vadd.f32 %v1049, %v1063
    %v1073 = vadd.f32 %v1050, %v1063
    %v1074 = vadd.f32 %v1051, %v1063
    %v1075 = vadd.f32 %v1052, %v1063
    %v1076 = vadd.f32 %v1053, %v1063
    %v1077 = vadd.f32 %v1054, %v1063
    %v1078 = vadd.f32 %v1055, %v1063
    %v1079 = vadd.f32 %v1056, %v1063
    %v1080 = vadd.f32 %v1057, %v1063
    %1081 = vst.msk [vmem:[%s6] sm:$0xff] %vm248, %v1065
    %1082 = vst.msk [vmem:[%s6 + $0x8] sm:$0xff] %vm248, %v1066
    %1083 = vst.msk [vmem:[%s6 + $0x10] sm:$0xff] %vm248, %v1067
    %1084 = vst.msk [vmem:[%s6 + $0x18] sm:$0xff] %vm248, %v1068
    %1085 = vst.msk [vmem:[%s6 + $0x20] sm:$0xff] %vm248, %v1069
    %1086 = vst.msk [vmem:[%s6 + $0x28] sm:$0xff] %vm248, %v1070
    %1087 = vst.msk [vmem:[%s6 + $0x30] sm:$0xff] %vm248, %v1071
    %1088 = vst.msk [vmem:[%s6 + $0x38] sm:$0xff] %vm248, %v1072
    %1089 = vst.msk [vmem:[%s6 + $0x40] sm:$0xff] %vm248, %v1073
    %1090 = vst.msk [vmem:[%s6 + $0x48] sm:$0xff] %vm248, %v1074
    %1091 = vst.msk [vmem:[%s6 + $0x50] sm:$0xff] %vm248, %v1075
    %1092 = vst.msk [vmem:[%s6 + $0x58] sm:$0xff] %vm248, %v1076
    %1093 = vst.msk [vmem:[%s6 + $0x60] sm:$0xff] %vm248, %v1077
    %1094 = vst.msk [vmem:[%s6 + $0x68] sm:$0xff] %vm248, %v1078
    %1095 = vst.msk [vmem:[%s6 + $0x70] sm:$0xff] %vm248, %v1079
    %1096 = vst.msk [vmem:[%s6 + $0x78] sm:$0xff] %vm248, %v1080
    // Predicated region
    $region102: #{tpu_custom_call.1} parent=1 // pred_check
      _
    $region103: #{tpu_custom_call.1} parent=1 // pred_check_branch
      %1098 = sbr.rel (0) target = $region105
    $region104: #{tpu_custom_call.1} parent=1 // pred_region
      _
    $region105: #{tpu_custom_call.1} parent=1 // pred_fallthru
      _
    // Predicated region
    $region106: #{tpu_custom_call.1} parent=1 // pred_check
      _
    $region107: #{tpu_custom_call.1} parent=1 // pred_check_branch
      %1100 = sbr.rel (0) target = $region109
    $region108: #{tpu_custom_call.1} parent=1 // pred_region
      _
    $region109: #{tpu_custom_call.1} parent=1 // pred_fallthru
      _

</llo_original>
